<compile_context>
chip_gen: v7x
topology: tpu7x:2x2x1
jax: 0.10.0
libtpu: 0.0.40
codegen_flags: <defaults>
</compile_context>

<pallas_src>
import functools

import jax
import jax.numpy as jnp
from jax import lax
from jax.experimental import pallas as pl
from jax.experimental.pallas import tpu as pltpu


# Cephes/XLA f32 erf: erf(x) ~= x * P(x^2) / Q(x^2), x clamped to [-4, 4].
_ERF_ALPHA = (-2.72614225801306e-10, 2.77068142495902e-08, -2.10102402082508e-06,
              -5.69250639462346e-05, -7.34990630326855e-04, -2.95459980854025e-03,
              -1.60960333262415e-02)
_ERF_BETA = (-1.45660718464996e-05, -2.13374055278905e-04, -1.68282697438203e-03,
             -7.37332916720468e-03, -1.42647390514189e-02)
_SQRT_HALF = 0.7071067811865476


def _erf_f32(x):
    x = jnp.clip(x, -4.0, 4.0)
    z = x * x
    p = jnp.float32(_ERF_ALPHA[0])
    for c in _ERF_ALPHA[1:]:
        p = p * z + jnp.float32(c)
    q = jnp.float32(_ERF_BETA[0])
    for c in _ERF_BETA[1:]:
        q = q * z + jnp.float32(c)
    # Exact reciprocal lands on the EUP slot instead of a VALU divide.
    return x * p * pl.reciprocal(q)


def _gelu_exact(x):
    # torch.nn.GELU() default is the exact (erf-based) GELU.
    return 0.5 * x * (1.0 + _erf_f32(x * _SQRT_HALF))


def _ffn_block_kernel(x_ref, gamma_ref, w01_ref, wout_ref, out_ref, ln_ref,
                      *acc_scratch, eps, tf):
    # x_ref      : (TM, D)      input rows (residual source)
    # gamma_ref  : (1, D)       RMSNorm weight
    # w01_ref    : (D, 2*TF)    fused [w0^T tile | w1^T tile]   (MXU dtype)
    # wout_ref   : (TF, D)      w_out^T tile                    (MXU dtype)
    # out_ref    : (TM, D)      output block, resident across the FF grid axis
    # ln_ref     : (TM, D)      RMS-normalized rows scratch     (MXU dtype)
    # acc_scratch: optional (TM, D) f32 accumulator (only when out dtype != f32)
    j = pl.program_id(1)
    acc_ref = acc_scratch[0] if acc_scratch else out_ref

    @pl.when(j == 0)
    def _():
        x = x_ref[...]
        xf = x.astype(jnp.float32)
        var = jnp.mean(xf * xf, axis=-1, keepdims=True)
        inv = lax.rsqrt(var + jnp.float32(eps))
        # HF CpmAntLayerNorm casts (x * rsqrt) back to the input dtype *before*
        # multiplying by the weight.
        ln = (xf * inv).astype(x.dtype) * gamma_ref[...]
        ln_ref[...] = ln.astype(ln_ref.dtype)
        if acc_scratch:
            acc_ref[...] = jnp.zeros_like(acc_ref)
        else:
            # f32 output: seed the resident output block with the residual and
            # accumulate the FFN partial sums directly into it (no acc scratch,
            # no epilogue add).
            out_ref[...] = x

    ln = ln_ref[...]
    # Single LHS push through the MXU for both projections.
    gh = jnp.dot(ln, w01_ref[...], preferred_element_type=jnp.float32)   # (TM, 2*TF)
    g = _gelu_exact(gh[:, :tf])
    h = gh[:, tf:]
    part = jnp.dot((g * h).astype(wout_ref.dtype), wout_ref[...],
                   preferred_element_type=jnp.float32)                    # (TM, D)
    acc_ref[...] += part.astype(acc_ref.dtype)

    if acc_scratch:
        @pl.when(j == pl.num_programs(1) - 1)
        def _():
            out_ref[...] = (x_ref[...].astype(jnp.float32)
                            + acc_ref[...]).astype(out_ref.dtype)


def _round_up(x, m):
    return ((x + m - 1) // m) * m


def _sublane(dtype):
    isz = jnp.dtype(dtype).itemsize
    return 8 if isz >= 4 else (16 if isz == 2 else 32)


def _default_vmem_limit():
    cap = 128 * 1024 * 1024
    try:
        info = pltpu.get_tpu_info()
        cap = int(getattr(info, "vmem_capacity_bytes", cap) or cap)
    except Exception:
        pass
    # ~15% headroom for Mosaic internal scratch (v7x: ~54 MiB, v5e/v6e: ~108 MiB).
    return int(cap * 0.85)


def _vmem_estimate(tm, tf, d, x_bytes, w_bytes, out_bytes, use_acc_scratch):
    est = 2 * (tm * d * x_bytes          # x tiles (double-buffered)
               + d * 2 * tf * w_bytes    # fused [w0|w1] tile
               + tf * d * w_bytes        # wout tile
               + tm * d * out_bytes      # output tile
               + d * 4)                  # gamma
    est += tm * d * w_bytes              # ln scratch
    if use_acc_scratch:
        est += tm * d * 4                # f32 accumulator
    return est


def make_cpmant_ffn_block(ln_weight, w0_weight, w1_weight, wout_weight, *,
                          eps=1e-6, tm=256, tf=512, mxu_dtype=None,
                          vmem_limit_bytes=None, weight_buffer_count=None):
    """Prepare CpmAntFFNBlock weights ONCE and return a forward(hidden_states) fn.

    Torch nn.Linear layouts: w0_weight, w1_weight: (dim_ff, hidden); wout_weight:
    (hidden, dim_ff); ln_weight: (hidden,).  Set mxu_dtype=jnp.bfloat16 to stream
    bf16 weight tiles to the MXU (f32 accumulation is kept).
    """
    FF, D = w0_weight.shape
    if w1_weight.shape != (FF, D) or wout_weight.shape != (D, FF):
        raise AssertionError("weight shapes inconsistent")
    if ln_weight.shape != (D,):
        raise AssertionError("layernorm weight must have shape (hidden_size,)")

    w_dtype = jnp.dtype(mxu_dtype) if mxu_dtype is not None else jnp.dtype(w0_weight.dtype)
    w_bytes = w_dtype.itemsize
    vmem_limit = int(vmem_limit_bytes) if vmem_limit_bytes else _default_vmem_limit()
    budget = int(vmem_limit * 0.9)

    # FF tile: multiple of 128, shrunk (if needed) so a full tm-row plan fits VMEM.
    TF = max(128, min(_round_up(tf, 128), _round_up(FF, 128)))
    while TF > 128 and _vmem_estimate(tm, TF, D, 4, w_bytes, 4, False) > budget:
        TF -= 128
    FFp = _round_up(FF, TF)

    def _pad_cols(wt):  # (D, FF) -> (D, FFp)
        return jnp.pad(wt, ((0, 0), (0, FFp - FF))) if FFp > FF else wt

    # Hoisted out of the per-forward path: transpose, zero-pad, fuse at TF
    # granularity ([w0_j | w1_j] per FF tile) and cast to the MXU dtype.
    w0t = _pad_cols(jnp.transpose(w0_weight)).astype(w_dtype)     # (D, FFp)
    w1t = _pad_cols(jnp.transpose(w1_weight)).astype(w_dtype)     # (D, FFp)
    nt = FFp // TF
    w01 = jnp.concatenate([w0t.reshape(D, nt, TF), w1t.reshape(D, nt, TF)],
                          axis=2).reshape(D, 2 * FFp)
    woutt = jnp.transpose(wout_weight)                            # (FF, D)
    if FFp > FF:
        woutt = jnp.pad(woutt, ((0, FFp - FF), (0, 0)))
    woutt = woutt.astype(w_dtype)
    gamma = ln_weight.reshape(1, D)

    kernel = functools.partial(_ffn_block_kernel, eps=float(eps), tf=TF)

    # Optional deeper buffering of the (only) per-step-changing tiles (v5e).
    w_pipeline = {}
    if weight_buffer_count and int(weight_buffer_count) != 2:
        w_pipeline = dict(pipeline_mode=pl.Buffered(int(weight_buffer_count)))

    def forward(hidden_states):
        B, S, Dh = hidden_states.shape
        if Dh != D:
            raise AssertionError("hidden_states.size(-1) != hidden_size")
        M = B * S
        x_dtype = hidden_states.dtype
        x_bytes = jnp.dtype(x_dtype).itemsize
        use_acc_scratch = x_dtype != jnp.float32

        # Row tile: sublane-aligned (16 for bf16), padded M, >= 2 tiles when
        # possible so the "parallel" axis feeds both TensorCores on v7x.
        sub = _sublane(x_dtype)
        TM = _round_up(min(tm, _round_up(M, sub)), sub)
        if M > sub and _round_up(M, TM) // TM < 2:
            TM = _round_up(-(-M // 2), sub)
        while TM > sub and _vmem_estimate(TM, TF, D, x_bytes, w_bytes, x_bytes,
                                          use_acc_scratch) > budget:
            TM = max(sub, _round_up(TM // 2, sub))
        Mp = _round_up(M, TM)

        x2 = hidden_states.reshape(M, D)
        if Mp > M:
            x2 = jnp.pad(x2, ((0, Mp - M), (0, 0)))

        grid = (Mp // TM, FFp // TF)
        scratch = [pltpu.VMEM((TM, D), w_dtype)]                  # ln (MXU dtype)
        if use_acc_scratch:
            scratch.append(pltpu.VMEM((TM, D), jnp.float32))      # f32 accumulator

        out = pl.pallas_call(
            kernel,
            out_shape=jax.ShapeDtypeStruct((Mp, D), x_dtype),
            grid_spec=pltpu.PrefetchScalarGridSpec(
                num_scalar_prefetch=0,
                grid=grid,
                in_specs=[
                    pl.BlockSpec((TM, D), lambda i, j: (i, 0)),                      # x rows
                    pl.BlockSpec((1, D), lambda i, j: (0, 0)),                       # RMSNorm weight
                    pl.BlockSpec((D, 2 * TF), lambda i, j: (0, j), **w_pipeline),    # [w0|w1] tile
                    pl.BlockSpec((TF, D), lambda i, j: (j, 0), **w_pipeline),        # wout tile
                ],
                out_specs=pl.BlockSpec((TM, D), lambda i, j: (i, 0)),
                scratch_shapes=scratch,
            ),
            compiler_params=pltpu.CompilerParams(
                dimension_semantics=("parallel", "arbitrary"),
                vmem_limit_bytes=vmem_limit,
            ),
        )(x2, gamma, w01, woutt)
        return out[:M].reshape(B, S, D)

    return forward


def cpmant_ffn_block(hidden_states, ln_weight, w0_weight, w1_weight, wout_weight,
                     *, eps=1e-6, tm=256, tf=512, mxu_dtype=None,
                     vmem_limit_bytes=None):
    """One-shot convenience wrapper.  Prefer make_cpmant_ffn_block so the weight
    transpose/fusion/cast happens once, outside the per-forward path."""
    fwd = make_cpmant_ffn_block(ln_weight, w0_weight, w1_weight, wout_weight,
                                eps=eps, tm=tm, tf=tf, mxu_dtype=mxu_dtype,
                                vmem_limit_bytes=vmem_limit_bytes)
    return fwd(hidden_states)


def _reference(x, ln_w, w0, w1, wout, eps):
    """Pure-JAX replica of the PyTorch CpmAntFFNBlock forward (no dropout), f32."""
    hp = lax.Precision.HIGHEST
    xf = x.astype(jnp.float32)
    var = jnp.mean(xf * xf, axis=-1, keepdims=True)
    ln = ((xf * lax.rsqrt(var + eps)).astype(x.dtype) * ln_w).astype(jnp.float32)
    gate = jax.nn.gelu(jnp.dot(ln, w0.T.astype(jnp.float32), precision=hp),
                       approximate=False)
    h = jnp.dot(ln, w1.T.astype(jnp.float32), precision=hp)
    out = jnp.dot(gate * h, wout.T.astype(jnp.float32), precision=hp)
    return xf + out


if __name__ == "__main__":
    # TODO(synk): dropout (config.dropout_p) is not implemented — the module is
    # exercised in eval / dropout_p=None mode, where dropout is the identity.
    B, S, D, FF = 2, 16, 64, 256
    eps = 1e-6

    key = jax.random.PRNGKey(0)
    k1, k2, k3, k4, k5 = jax.random.split(key, 5)
    x = jax.random.normal(k1, (B, S, D), dtype=jnp.float32)
    ln_w = 1.0 + 0.1 * jax.random.normal(k2, (D,), dtype=jnp.float32)
    # torch nn.Linear weight layouts: (out_features, in_features)
    w0 = 0.05 * jax.random.normal(k3, (FF, D), dtype=jnp.float32)    # w_0.weight
    w1 = 0.05 * jax.random.normal(k4, (FF, D), dtype=jnp.float32)    # w_1.weight
    wout = 0.05 * jax.random.normal(k5, (D, FF), dtype=jnp.float32)  # w_out.weight

    # --- f32 path (exact module semantics). Small tiles so the test exercises
    # both grid axes (2 row tiles x 2 FF tiles); weights prepared once. ---
    fwd_f32 = make_cpmant_ffn_block(ln_w, w0, w1, wout, eps=eps, tm=16, tf=128)
    y = jax.block_until_ready(fwd_f32(x))
    ref = _reference(x, ln_w, w0, w1, wout, eps)
    assert y.shape == (B, S, D), y.shape
    err32 = float(jnp.max(jnp.abs(y.astype(jnp.float32) - ref)))
    assert jnp.allclose(y.astype(jnp.float32), ref, atol=1e-4, rtol=1e-4), err32

    # --- bf16 MXU path (perf config): bf16 activations + bf16 weight tiles fed
    # to the MXU with f32 accumulation. ---
    x16 = x.astype(jnp.bfloat16)
    fwd_bf16 = make_cpmant_ffn_block(ln_w, w0, w1, wout, eps=eps, tm=16, tf=128,
                                     mxu_dtype=jnp.bfloat16)
    y16 = jax.block_until_ready(fwd_bf16(x16))
    ref16 = _reference(x16, ln_w, w0, w1, wout, eps)
    assert y16.shape == (B, S, D), y16.shape
    err16 = float(jnp.max(jnp.abs(y16.astype(jnp.float32) - ref16)))
    assert jnp.allclose(y16.astype(jnp.float32), ref16, atol=8e-2, rtol=8e-2), err16

    print("KERNEL_OK")
</pallas_src>

<mosaic_0001>
module attributes {stable_mosaic.version = 11 : i64} {
  func.func @_ffn_block_kernel(%arg0: i32, %arg1: i32, %arg2: memref<16x64xf32, #tpu.memory_space<vmem>>, %arg3: memref<1x64xf32, #tpu.memory_space<vmem>>, %arg4: memref<64x256xf32, #tpu.memory_space<vmem>>, %arg5: memref<128x64xf32, #tpu.memory_space<vmem>>, %arg6: memref<16x64xf32, #tpu.memory_space<vmem>>, %arg7: memref<16x64xf32, #tpu.memory_space<vmem>>) attributes {dimension_semantics = [#tpu.dimension_semantics<parallel>, #tpu.dimension_semantics<arbitrary>], iteration_bounds = array<i64: 2, 2>, scalar_prefetch = 0 : i64, scratch_operands = 1 : i64, tpu.core_type = #tpu.core_type<tc>, window_params = [{transform_indices = @transform_0, window_bounds = array<i64: 16, 64>}, {pipeline_mode = #tpu.pipeline_mode<synchronous>, transform_indices = @transform_1, window_bounds = array<i64: 1, 64>}, {transform_indices = @transform_2, window_bounds = array<i64: 64, 256>}, {transform_indices = @transform_3, window_bounds = array<i64: 128, 64>}, {transform_indices = @transform_4, window_bounds = array<i64: 16, 64>}]} {
    %c0_i32 = arith.constant 0 : i32
    %0 = arith.cmpi eq, %arg1, %c0_i32 : i32
    %1 = arith.extui %0 : i1 to i32
    %c0_i32_0 = arith.constant 0 : i32
    %2 = arith.cmpi ne, %1, %c0_i32_0 : i32
    scf.if %2 {
      %c0_28 = arith.constant 0 : index
      %c0_29 = arith.constant 0 : index
      %61 = vector.load %arg2[%c0_28, %c0_29] : memref<16x64xf32, #tpu.memory_space<vmem>>, vector<16x64xf32>
      %62 = arith.mulf %61, %61 : vector<16x64xf32>
      %cst_30 = arith.constant dense<0.000000e+00> : vector<16xf32>
      %63 = vector.multi_reduction <add>, %62, %cst_30 [1] : vector<16x64xf32> to vector<16xf32>
      %64 = vector.shape_cast %63 : vector<16xf32> to vector<16x1xf32>
      %cst_31 = arith.constant 6.400000e+01 : f32
      %65 = vector.broadcast %cst_31 : f32 to vector<16x1xf32>
      %66 = arith.divf %64, %65 : vector<16x1xf32>
      %cst_32 = arith.constant 9.99999997E-7 : f32
      %67 = vector.broadcast %cst_32 : f32 to vector<16x1xf32>
      %68 = arith.addf %66, %67 : vector<16x1xf32>
      %69 = math.rsqrt %68 : vector<16x1xf32>
      %70 = vector.broadcast %69 : vector<16x1xf32> to vector<16x64xf32>
      %71 = arith.mulf %61, %70 : vector<16x64xf32>
      %c0_33 = arith.constant 0 : index
      %c0_34 = arith.constant 0 : index
      %72 = vector.load %arg3[%c0_33, %c0_34] : memref<1x64xf32, #tpu.memory_space<vmem>>, vector<1x64xf32>
      %73 = vector.broadcast %72 : vector<1x64xf32> to vector<16x64xf32>
      %74 = arith.mulf %71, %73 : vector<16x64xf32>
      %c0_35 = arith.constant 0 : index
      %c0_36 = arith.constant 0 : index
      %75 = vector.load %arg7[%c0_35, %c0_36] : memref<16x64xf32, #tpu.memory_space<vmem>>, vector<16x64xf32>
      tpu.vector_store %arg7[%c0_35, %c0_36], %74 {strides = array<i32>} : memref<16x64xf32, #tpu.memory_space<vmem>>, vector<16x64xf32>,
      %c0_37 = arith.constant 0 : index
      %c0_38 = arith.constant 0 : index
      %76 = vector.load %arg6[%c0_37, %c0_38] : memref<16x64xf32, #tpu.memory_space<vmem>>, vector<16x64xf32>
      tpu.vector_store %arg6[%c0_37, %c0_38], %61 {strides = array<i32>} : memref<16x64xf32, #tpu.memory_space<vmem>>, vector<16x64xf32>,
    } else {
    }
    %c0 = arith.constant 0 : index
    %c0_1 = arith.constant 0 : index
    %3 = vector.load %arg7[%c0, %c0_1] : memref<16x64xf32, #tpu.memory_space<vmem>>, vector<16x64xf32>
    %c0_2 = arith.constant 0 : index
    %c0_3 = arith.constant 0 : index
    %4 = vector.load %arg4[%c0_2, %c0_3] : memref<64x256xf32, #tpu.memory_space<vmem>>, vector<64x256xf32>
    %cst = arith.constant dense<0.000000e+00> : vector<16x256xf32>
    %5 = tpu.matmul %3, %4, %cst {dimension_numbers = #tpu.dot_dimension_numbers<[1], [0], [0], [1], [0, 0, 1, 1], [], []>} : vector<16x64xf32>, vector<64x256xf32>, vector<16x256xf32> -> vector<16x256xf32>
    %6 = vector.extract_strided_slice %5 {offsets = [0, 0], sizes = [16, 128], strides = [1, 1]} : vector<16x256xf32> to vector<16x128xf32>
    %cst_4 = arith.constant 5.000000e-01 : f32
    %7 = vector.broadcast %cst_4 : f32 to vector<16x128xf32>
    %8 = arith.mulf %7, %6 : vector<16x128xf32>
    %cst_5 = arith.constant 0.707106769 : f32
    %9 = vector.broadcast %cst_5 : f32 to vector<16x128xf32>
    %10 = arith.mulf %6, %9 : vector<16x128xf32>
    %cst_6 = arith.constant -4.000000e+00 : f32
    %cst_7 = arith.constant 4.000000e+00 : f32
    %11 = vector.broadcast %cst_6 : f32 to vector<16x128xf32>
    %12 = arith.maximumf %11, %10 : vector<16x128xf32>
    %13 = vector.broadcast %cst_7 : f32 to vector<16x128xf32>
    %14 = arith.minimumf %13, %12 : vector<16x128xf32>
    %15 = arith.mulf %14, %14 : vector<16x128xf32>
    %cst_8 = arith.constant -2.72614237E-10 : f32
    %16 = vector.broadcast %cst_8 : f32 to vector<16x128xf32>
    %17 = arith.mulf %16, %15 : vector<16x128xf32>
    %cst_9 = arith.constant 2.77068146E-8 : f32
    %18 = vector.broadcast %cst_9 : f32 to vector<16x128xf32>
    %19 = arith.addf %17, %18 : vector<16x128xf32>
    %20 = arith.mulf %19, %15 : vector<16x128xf32>
    %cst_10 = arith.constant -2.10102394E-6 : f32
    %21 = vector.broadcast %cst_10 : f32 to vector<16x128xf32>
    %22 = arith.addf %20, %21 : vector<16x128xf32>
    %23 = arith.mulf %22, %15 : vector<16x128xf32>
    %cst_11 = arith.constant -5.69250624E-5 : f32
    %24 = vector.broadcast %cst_11 : f32 to vector<16x128xf32>
    %25 = arith.addf %23, %24 : vector<16x128xf32>
    %26 = arith.mulf %25, %15 : vector<16x128xf32>
    %cst_12 = arith.constant -7.34990637E-4 : f32
    %27 = vector.broadcast %cst_12 : f32 to vector<16x128xf32>
    %28 = arith.addf %26, %27 : vector<16x128xf32>
    %29 = arith.mulf %28, %15 : vector<16x128xf32>
    %cst_13 = arith.constant -2.954600e-03 : f32
    %30 = vector.broadcast %cst_13 : f32 to vector<16x128xf32>
    %31 = arith.addf %29, %30 : vector<16x128xf32>
    %32 = arith.mulf %31, %15 : vector<16x128xf32>
    %cst_14 = arith.constant -0.0160960332 : f32
    %33 = vector.broadcast %cst_14 : f32 to vector<16x128xf32>
    %34 = arith.addf %32, %33 : vector<16x128xf32>
    %cst_15 = arith.constant -1.45660715E-5 : f32
    %35 = vector.broadcast %cst_15 : f32 to vector<16x128xf32>
    %36 = arith.mulf %35, %15 : vector<16x128xf32>
    %cst_16 = arith.constant -2.13374049E-4 : f32
    %37 = vector.broadcast %cst_16 : f32 to vector<16x128xf32>
    %38 = arith.addf %36, %37 : vector<16x128xf32>
    %39 = arith.mulf %38, %15 : vector<16x128xf32>
    %cst_17 = arith.constant -0.00168282702 : f32
    %40 = vector.broadcast %cst_17 : f32 to vector<16x128xf32>
    %41 = arith.addf %39, %40 : vector<16x128xf32>
    %42 = arith.mulf %41, %15 : vector<16x128xf32>
    %cst_18 = arith.constant -0.00737332925 : f32
    %43 = vector.broadcast %cst_18 : f32 to vector<16x128xf32>
    %44 = arith.addf %42, %43 : vector<16x128xf32>
    %45 = arith.mulf %44, %15 : vector<16x128xf32>
    %cst_19 = arith.constant -0.0142647391 : f32
    %46 = vector.broadcast %cst_19 : f32 to vector<16x128xf32>
    %47 = arith.addf %45, %46 : vector<16x128xf32>
    %48 = arith.mulf %14, %34 : vector<16x128xf32>
    %49 = tpu.reciprocal %47 : vector<16x128xf32> -> vector<16x128xf32>
    %50 = arith.mulf %48, %49 : vector<16x128xf32>
    %cst_20 = arith.constant 1.000000e+00 : f32
    %51 = vector.broadcast %cst_20 : f32 to vector<16x128xf32>
    %52 = arith.addf %51, %50 : vector<16x128xf32>
    %53 = arith.mulf %8, %52 : vector<16x128xf32>
    %54 = vector.extract_strided_slice %5 {offsets = [0, 128], sizes = [16, 128], strides = [1, 1]} : vector<16x256xf32> to vector<16x128xf32>
    %55 = arith.mulf %53, %54 : vector<16x128xf32>
    %c0_21 = arith.constant 0 : index
    %c0_22 = arith.constant 0 : index
    %56 = vector.load %arg5[%c0_21, %c0_22] : memref<128x64xf32, #tpu.memory_space<vmem>>, vector<128x64xf32>
    %cst_23 = arith.constant dense<0.000000e+00> : vector<16x64xf32>
    %57 = tpu.matmul %55, %56, %cst_23 {dimension_numbers = #tpu.dot_dimension_numbers<[1], [0], [0], [1], [0, 0, 1, 1], [], []>} : vector<16x128xf32>, vector<128x64xf32>, vector<16x64xf32> -> vector<16x64xf32>
    %c0_24 = arith.constant 0 : index
    %c0_25 = arith.constant 0 : index
    %58 = vector.load %arg6[%c0_24, %c0_25] : memref<16x64xf32, #tpu.memory_space<vmem>>, vector<16x64xf32>
    %59 = arith.addf %58, %57 : vector<16x64xf32>
    %c0_26 = arith.constant 0 : index
    %c0_27 = arith.constant 0 : index
    %60 = vector.load %arg6[%c0_26, %c0_27] : memref<16x64xf32, #tpu.memory_space<vmem>>, vector<16x64xf32>
    tpu.vector_store %arg6[%c0_26, %c0_27], %59 {strides = array<i32>} : memref<16x64xf32, #tpu.memory_space<vmem>>, vector<16x64xf32>,
    return
  }
  func.func @transform_0(%arg0: i32, %arg1: i32) -> (i32, i32) {
    %c0_i32 = arith.constant 0 : i32
    %c0_i32_0 = arith.constant 0 : i32
    return %arg0, %c0_i32 : i32, i32
  }
  func.func @transform_1(%arg0: i32, %arg1: i32) -> (i32, i32) {
    %c0_i32 = arith.constant 0 : i32
    %c0_i32_0 = arith.constant 0 : i32
    %c0_i32_1 = arith.constant 0 : i32
    return %c0_i32, %c0_i32_0 : i32, i32
  }
  func.func @transform_2(%arg0: i32, %arg1: i32) -> (i32, i32) {
    %c0_i32 = arith.constant 0 : i32
    %c0_i32_0 = arith.constant 0 : i32
    return %c0_i32, %arg1 : i32, i32
  }
  func.func @transform_3(%arg0: i32, %arg1: i32) -> (i32, i32) {
    %c0_i32 = arith.constant 0 : i32
    %c0_i32_0 = arith.constant 0 : i32
    return %arg1, %c0_i32 : i32, i32
  }
  func.func @transform_4(%arg0: i32, %arg1: i32) -> (i32, i32) {
    %c0_i32 = arith.constant 0 : i32
    %c0_i32_0 = arith.constant 0 : i32
    return %arg0, %c0_i32 : i32, i32
  }
}

</mosaic_0001>

<llo_original>
// kernel: tpu_custom_call.1
$region0: #{tpu_custom_call.1}
  #allocation0 [shape = 'u32[]', space=smem, size = 0x4, offset = 0x4, fixed_abs, tag = 'smem constant byte address 0x4 - core index']
  #allocation1 [shape = 'u32[144,128]{1,0:T(1,128)}', space=vmem, size = 0x12000, scoped, tag = 'internal scratch']
  #allocation2 [shape = 'f32[16,64]{1,0:T(8,128)}', space=vmem, size = 0x2000, scoped, tag = 'scratch operand']
  %s0 = inlined_call_operand.hbm [shape: f32[32,64], index: 0, kind: input, shape index: {}]
  %s1 = inlined_call_operand.hbm [shape: f32[1,64], index: 1, kind: input, shape index: {}]
  %s2 = inlined_call_operand.hbm [shape: f32[64,512], index: 2, kind: input, shape index: {}]
  %s3 = inlined_call_operand.hbm [shape: f32[256,64], index: 3, kind: input, shape index: {}]
  %s4 = inlined_call_operand.hbm [shape: f32[32,64], index: 4, kind: output, shape index: {}]
  %s5 = sld [smem:[#allocation0]]
  $region69: #{tpu_custom_call.1} parent=0
    _
  %s7 = ssub.s32 1, %s5
  %s8 = scalar_select 0, %s7, %s5
  $region1: #{tpu_custom_call.1} parent=0
    #allocation3 [shape = 'u8[16384]{0}', space=vmem, size = 0x4000, scoped, tag = 'input window, operand 0']
    #allocation4 [shape = 's32[2]{0}', space=sflag, size = 0x8, scoped, tag = 'scoped memory for tpu_custom_call.1']
    #allocation5 [shape = 's32[2]{0}', space=sflag, size = 0x8, scoped, tag = 'scoped memory for tpu_custom_call.1']
    #allocation6 [shape = 'u8[512]{0}', space=vmem, size = 0x400, scoped, tag = 'input window, operand 1, single buffered']
    #allocation7 [shape = 's32[1]{0}', space=sflag, size = 0x4, scoped, tag = 'scoped memory for tpu_custom_call.1']
    #allocation8 [shape = 'u8[131072]{0}', space=vmem, size = 0x20000, scoped, tag = 'input window, operand 2']
    #allocation9 [shape = 'u8[131072]{0}', space=vmem, size = 0x20000, scoped, tag = 'input window, operand 3']
    #allocation10 [shape = 'u8[16384]{0}', space=vmem, size = 0x4000, scoped, tag = 'output window, operand 0']
    %9 = vsyncpa [#allocation4], 0
    %s10 = scalar_lea.sflag [#allocation4], 1
    %11 = vsyncpa %s10, 0
    %12 = vsyncpa [#allocation7], 0
    %13 = vsyncpa [#allocation5], 0
    %s14 = scalar_lea.sflag [#allocation5], 1
    %15 = vsyncpa %s14, 0
    loop: start=0, step=1, limit=6
    $region2: #{tpu_custom_call.1} parent=1 // loop_pre_header
      _
    $region3: #{tpu_custom_call.1} parent=1 // loop_header
      %s17 = sphi 0, %s21
      %p18 = scmp.ge.s32.totalorder %s17, 6
      %s24 = sphi 0, %s36
      %s25 = sphi 0, %s32
      %s26 = sphi 0, %s24
      %s27 = sphi 0, %s25
      %s28 = sphi 0, %s26
      %s29 = sphi 0, %s27
      %s39 = sphi 0, %s41
      %s42 = sphi 0, %s39
      %s43 = sphi 0, %s42
      %s59 = sphi 0, %s43
      %s63 = sphi 0, %s63
      %s65 = sphi 0, %s63
      %s66 = sphi 0, %s65
      %s80 = sphi 0, %s66
      %s86 = sphi 0, %s88
      %s89 = sphi 0, %s86
      %s90 = sphi 0, %s89
      %s106 = sphi 0, %s90
      %s112 = sphi 0, %s114
      %s115 = sphi 0, %s112
      %s116 = sphi 0, %s115
      %s132 = sphi 0, %s116
      %s138 = sphi 0, %s140
      %s141 = sphi 0, %s138
      %s142 = sphi 0, %s141
      %s158 = sphi 0, %s142
    $region4: #{tpu_custom_call.1} parent=1 // loop_header_branch
      %20 = sbr.rel (%p18) target = $region8
    $region5: #{tpu_custom_call.1} parent=1 // loop_body
      %s22 = ssub.s32 %s17, 1
      %s23 = ssub.s32 %s17, 2
      %s30 = sadd.s32 1, %s25
      %p31 = scmp.ge.s32.totalorder %s30, 2
      %s32 = scalar_select %p31, 0, %s30
      %s33 = sadd.s32 1, %s24
      %s34 = scalar_select %p31, %s33, %s24
      %p35 = scmp.ge.s32.totalorder %s34, 2
      %s36 = scalar_select %p35, 0, %s34
      %s37 = ssub.s32 %s24, %s36
      %p38 = scmp.eq.s32.totalorder %s37, 0
      %s40 = sadd.s32 %s39, 1
      %s41 = scalar_select %p38, %s39, %s40
      %p44 = pneg %p38
      %p45 = scmp.eq.s32.totalorder %s17, 3
      %p46 = por %p44, %p45
      %p47 = scmp.ne.s32.totalorder %s39, %s42
      %p48 = scmp.eq.s32.totalorder %s17, 0
      %p49 = por %p47, %p48
      %p50 = scmp.ne.s32.totalorder %s39, %s42
      %p51 = scmp.eq.s32.totalorder %s22, 3
      %p52 = por %p50, %p51
      %p53 = scmp.ne.s32.totalorder %s42, %s43
      %p54 = scmp.eq.s32.totalorder %s22, 0
      %p55 = por %p53, %p54
      %p56 = scmp.ne.s32.totalorder %s42, %s43
      %p57 = scmp.eq.s32.totalorder %s23, 3
      %p58 = por %p56, %p57
      %p60 = scmp.ne.s32.totalorder %s43, %s59
      %p61 = scmp.eq.s32.totalorder %s23, 0
      %p62 = por %p60, %p61
      %s64 = sadd.s32 %s63, 1
      %p67 = scmp.eq.s32.totalorder %s17, 3
      %p68 = scmp.ne.s32.totalorder %s63, %s65
      %p69 = scmp.eq.s32.totalorder %s17, 0
      %p70 = por %p68, %p69
      %p71 = scmp.ne.s32.totalorder %s63, %s65
      %p72 = scmp.eq.s32.totalorder %s22, 3
      %p73 = por %p71, %p72
      %p74 = scmp.ne.s32.totalorder %s65, %s66
      %p75 = scmp.eq.s32.totalorder %s22, 0
      %p76 = por %p74, %p75
      %p77 = scmp.ne.s32.totalorder %s65, %s66
      %p78 = scmp.eq.s32.totalorder %s23, 3
      %p79 = por %p77, %p78
      %p81 = scmp.ne.s32.totalorder %s66, %s80
      %p82 = scmp.eq.s32.totalorder %s23, 0
      %p83 = por %p81, %p82
      %s84 = ssub.s32 %s25, %s32
      %p85 = scmp.eq.s32.totalorder %s84, 0
      %s87 = sadd.s32 %s86, 1
      %s88 = scalar_select %p85, %s86, %s87
      %p91 = pneg %p85
      %p92 = scmp.eq.s32.totalorder %s17, 3
      %p93 = por %p91, %p92
      %p94 = scmp.ne.s32.totalorder %s86, %s89
      %p95 = scmp.eq.s32.totalorder %s17, 0
      %p96 = por %p94, %p95
      %p97 = scmp.ne.s32.totalorder %s86, %s89
      %p98 = scmp.eq.s32.totalorder %s22, 3
      %p99 = por %p97, %p98
      %p100 = scmp.ne.s32.totalorder %s89, %s90
      %p101 = scmp.eq.s32.totalorder %s22, 0
      %p102 = por %p100, %p101
      %p103 = scmp.ne.s32.totalorder %s89, %s90
      %p104 = scmp.eq.s32.totalorder %s23, 3
      %p105 = por %p103, %p104
      %p107 = scmp.ne.s32.totalorder %s90, %s106
      %p108 = scmp.eq.s32.totalorder %s23, 0
      %p109 = por %p107, %p108
      %s110 = ssub.s32 %s25, %s32
      %p111 = scmp.eq.s32.totalorder %s110, 0
      %s113 = sadd.s32 %s112, 1
      %s114 = scalar_select %p111, %s112, %s113
      %p117 = pneg %p111
      %p118 = scmp.eq.s32.totalorder %s17, 3
      %p119 = por %p117, %p118
      %p120 = scmp.ne.s32.totalorder %s112, %s115
      %p121 = scmp.eq.s32.totalorder %s17, 0
      %p122 = por %p120, %p121
      %p123 = scmp.ne.s32.totalorder %s112, %s115
      %p124 = scmp.eq.s32.totalorder %s22, 3
      %p125 = por %p123, %p124
      %p126 = scmp.ne.s32.totalorder %s115, %s116
      %p127 = scmp.eq.s32.totalorder %s22, 0
      %p128 = por %p126, %p127
      %p129 = scmp.ne.s32.totalorder %s115, %s116
      %p130 = scmp.eq.s32.totalorder %s23, 3
      %p131 = por %p129, %p130
      %p133 = scmp.ne.s32.totalorder %s116, %s132
      %p134 = scmp.eq.s32.totalorder %s23, 0
      %p135 = por %p133, %p134
      %s136 = ssub.s32 %s24, %s36
      %p137 = scmp.eq.s32.totalorder %s136, 0
      %s139 = sadd.s32 %s138, 1
      %s140 = scalar_select %p137, %s138, %s139
      %p143 = pneg %p137
      %p144 = scmp.eq.s32.totalorder %s17, 3
      %p145 = por %p143, %p144
      %p146 = scmp.ne.s32.totalorder %s138, %s141
      %p147 = scmp.eq.s32.totalorder %s17, 0
      %p148 = por %p146, %p147
      %p149 = scmp.ne.s32.totalorder %s138, %s141
      %p150 = scmp.eq.s32.totalorder %s22, 3
      %p151 = por %p149, %p150
      %p152 = scmp.ne.s32.totalorder %s141, %s142
      %p153 = scmp.eq.s32.totalorder %s22, 0
      %p154 = por %p152, %p153
      %p155 = scmp.ne.s32.totalorder %s141, %s142
      %p156 = scmp.eq.s32.totalorder %s23, 3
      %p157 = por %p155, %p156
      %p159 = scmp.ne.s32.totalorder %s142, %s158
      %p160 = scmp.eq.s32.totalorder %s23, 0
      %p161 = por %p159, %p160
      %p162 = scmp.le.s32.totalorder 1, %s17
      %p163 = scmp.lt.s32.totalorder %s17, 5
      %p164 = pnand %p162, %p163
      %p165 = pneg %p164
      // Predicated region
      $region9: #{tpu_custom_call.1} parent=5 // pred_check
        _
      $region10: #{tpu_custom_call.1} parent=5 // pred_check_branch
        %167 = sbr.rel (%p164) target = $region12
      $region11: #{tpu_custom_call.1} parent=5 // pred_region
        %s168 = ssub.s32 %s17, 1
        // Predicated region
        $region13: #{tpu_custom_call.1} parent=11 // pred_check
          %p169 = pneg %p76
        $region14: #{tpu_custom_call.1} parent=11 // pred_check_branch
          %171 = sbr.rel (%p169) target = $region16
        $region15: #{tpu_custom_call.1} parent=11 // pred_region
          %s173 = ssub.s32 16, 16
          %174 = vsyncadd [#allocation7], %s173
          %s176 = sshll.u32 [#allocation6], 4
          %s177 = int_to_ptr.vmem [resolvable:$true] %s176
          %179 = dma.hbm_to_vmem [thread:$0]  %s1, 16, %s177, [#allocation7]
        $region16: #{tpu_custom_call.1} parent=11 // pred_fallthru
          _
      $region12: #{tpu_custom_call.1} parent=5 // pred_fallthru
        _
      %p180 = scmp.lt.s32.totalorder %s17, 4
      // Predicated region
      $region17: #{tpu_custom_call.1} parent=5 // pred_check
        %p181 = pneg %p180
      $region18: #{tpu_custom_call.1} parent=5 // pred_check_branch
        %183 = sbr.rel (%p181) target = $region20
      $region19: #{tpu_custom_call.1} parent=5 // pred_region
        // Predicated region
        $region21: #{tpu_custom_call.1} parent=19 // pred_check
          %p184 = pneg %p49
        $region22: #{tpu_custom_call.1} parent=19 // pred_check_branch
          %186 = sbr.rel (%p184) target = $region24
        $region23: #{tpu_custom_call.1} parent=19 // pred_region
          %s187 = sand.u32 %s17, 1
          %s188 = scalar_lea.sflag [#allocation4], %s187
          %s189 = sand.u32 %s39, 1
          %s190 = smul.addr %s189, 16
          %s191 = scalar_lea.vmem [#allocation3], %s190
          %s192 = smul.u32 2, %s24
          %s194 = ssub.s32 256, 256
          %195 = vsyncadd %s188, %s194
          %s196 = smul.addr %s192, 128
          %s197 = scalar_lea.hbm %s0, %s196
          %s198 = sshll.u32 %s191, 4
          %s199 = int_to_ptr.vmem [resolvable:$true] %s198
          %204 = dma.hbm_to_vmem [thread:$0]  %s197, 256, %s199, %s188, 128, 128, 8
        $region24: #{tpu_custom_call.1} parent=19 // pred_fallthru
          _
        // Predicated region
        $region25: #{tpu_custom_call.1} parent=19 // pred_check
          %p205 = pneg %p96
        $region26: #{tpu_custom_call.1} parent=19 // pred_check_branch
          %207 = sbr.rel (%p205) target = $region28
        $region27: #{tpu_custom_call.1} parent=19 // pred_region
          %s208 = sand.u32 %s17, 1
          %s209 = scalar_lea.sflag [#allocation4], %s208
          %s210 = sand.u32 %s86, 1
          %s211 = smul.addr %s210, 128
          %s212 = scalar_lea.vmem [#allocation8], %s211
          %s213 = smul.u32 2, %s25
          %s215 = ssub.s32 2048, 2048
          %216 = vsyncadd %s209, %s215
          %s217 = smul.addr %s213, 128
          %s218 = scalar_lea.hbm %s2, %s217
          %s219 = sshll.u32 %s212, 4
          %s220 = int_to_ptr.vmem [resolvable:$true] %s219
          %225 = dma.hbm_to_vmem [thread:$0]  %s218, 2048, %s220, %s209, 512, 256, 16
        $region28: #{tpu_custom_call.1} parent=19 // pred_fallthru
          _
        // Predicated region
        $region29: #{tpu_custom_call.1} parent=19 // pred_check
          %p226 = pneg %p122
        $region30: #{tpu_custom_call.1} parent=19 // pred_check_branch
          %228 = sbr.rel (%p226) target = $region32
        $region31: #{tpu_custom_call.1} parent=19 // pred_region
          %s229 = sand.u32 %s17, 1
          %s230 = scalar_lea.sflag [#allocation4], %s229
          %s231 = sand.u32 %s112, 1
          %s232 = smul.addr %s231, 128
          %s233 = scalar_lea.vmem [#allocation9], %s232
          %s234 = smul.u32 16, %s25
          %s236 = ssub.s32 2048, 2048
          %237 = vsyncadd %s230, %s236
          %s238 = smul.addr %s234, 128
          %s239 = scalar_lea.hbm %s3, %s238
          %s240 = sshll.u32 %s233, 4
          %s241 = int_to_ptr.vmem [resolvable:$true] %s240
          %246 = dma.hbm_to_vmem [thread:$0]  %s239, 2048, %s241, %s230, 128, 128, 8
        $region32: #{tpu_custom_call.1} parent=19 // pred_fallthru
          _
      $region20: #{tpu_custom_call.1} parent=5 // pred_fallthru
        _
      %p247 = scmp.le.s32.totalorder 1, %s17
      %p248 = scmp.lt.s32.totalorder %s17, 5
      %p249 = pnand %p247, %p248
      %p250 = pneg %p249
      // Predicated region
      $region33: #{tpu_custom_call.1} parent=5 // pred_check
        _
      $region34: #{tpu_custom_call.1} parent=5 // pred_check_branch
        %252 = sbr.rel (%p249) target = $region36
      $region35: #{tpu_custom_call.1} parent=5 // pred_region
        %s253 = ssub.s32 %s17, 1
        %s254 = sand.u32 %s22, 1
        %s255 = scalar_lea.sflag [#allocation4], %s254
        %s256 = sand.u32 %s42, 1
        %s257 = smul.addr %s256, 16
        %s258 = scalar_lea.vmem [#allocation3], %s257
        // Predicated region
        $region37: #{tpu_custom_call.1} parent=35 // pred_check
          %p259 = pneg %p55
        $region38: #{tpu_custom_call.1} parent=35 // pred_check_branch
          %261 = sbr.rel (%p259) target = $region40
        $region39: #{tpu_custom_call.1} parent=35 // pred_region
          %262 = dma.done %s255, 256
        $region40: #{tpu_custom_call.1} parent=35 // pred_fallthru
          _
        // Predicated region
        $region41: #{tpu_custom_call.1} parent=35 // pred_check
          %p263 = pneg %p76
        $region42: #{tpu_custom_call.1} parent=35 // pred_check_branch
          %265 = sbr.rel (%p263) target = $region44
        $region43: #{tpu_custom_call.1} parent=35 // pred_region
          %266 = dma.done [#allocation7], 16
        $region44: #{tpu_custom_call.1} parent=35 // pred_fallthru
          _
        %s267 = sand.u32 %s22, 1
        %s268 = scalar_lea.sflag [#allocation4], %s267
        %s269 = sand.u32 %s89, 1
        %s270 = smul.addr %s269, 128
        %s271 = scalar_lea.vmem [#allocation8], %s270
        // Predicated region
        $region45: #{tpu_custom_call.1} parent=35 // pred_check
          %p272 = pneg %p102
        $region46: #{tpu_custom_call.1} parent=35 // pred_check_branch
          %274 = sbr.rel (%p272) target = $region48
        $region47: #{tpu_custom_call.1} parent=35 // pred_region
          %275 = dma.done %s268, 2048
        $region48: #{tpu_custom_call.1} parent=35 // pred_fallthru
          _
        %s276 = sand.u32 %s22, 1
        %s277 = scalar_lea.sflag [#allocation4], %s276
        %s278 = sand.u32 %s115, 1
        %s279 = smul.addr %s278, 128
        %s280 = scalar_lea.vmem [#allocation9], %s279
        // Predicated region
        $region49: #{tpu_custom_call.1} parent=35 // pred_check
          %p281 = pneg %p128
        $region50: #{tpu_custom_call.1} parent=35 // pred_check_branch
          %283 = sbr.rel (%p281) target = $region52
        $region51: #{tpu_custom_call.1} parent=35 // pred_region
          %284 = dma.done %s277, 2048
        $region52: #{tpu_custom_call.1} parent=35 // pred_fallthru
          _
        %s285 = sand.u32 %s22, 1
        %s286 = scalar_lea.sflag [#allocation4], %s285
        %s287 = sand.u32 %s42, 1
        %s288 = smul.addr %s287, 16
        %s289 = scalar_lea.vmem [#allocation3], %s288
        %p290 = pneg %p55
        %p291 = pneg %p52
        %p292 = pneg %p76
        %p293 = pneg %p73
        %s294 = sand.u32 %s22, 1
        %s295 = scalar_lea.sflag [#allocation4], %s294
        %s296 = sand.u32 %s89, 1
        %s297 = smul.addr %s296, 128
        %s298 = scalar_lea.vmem [#allocation8], %s297
        %p299 = pneg %p102
        %p300 = pneg %p99
        %s301 = sand.u32 %s22, 1
        %s302 = scalar_lea.sflag [#allocation4], %s301
        %s303 = sand.u32 %s115, 1
        %s304 = smul.addr %s303, 128
        %s305 = scalar_lea.vmem [#allocation9], %s304
        %p306 = pneg %p128
        %p307 = pneg %p125
        %p308 = pneg %p154
        %p309 = pneg %p151
        %s310 = sand.u32 %s141, 1
        %s311 = scalar_lea.sflag [#allocation5], %s310
        %s312 = sand.u32 %s141, 1
        %s313 = smul.addr %s312, 16
        %s314 = scalar_lea.vmem [#allocation10], %s313
        %s315 = smul.u32 2, %s26
        %s316 = smul.u32 2, %s27
        %s317 = smul.u32 16, %s27
        %s318 = smul.u32 2, %s26
        %p319 = scmp.eq.s32.totalorder %s27, 0
        // Predicated region
        $region53: #{tpu_custom_call.1} parent=35 // pred_check
          %p320 = pneg %p319
        $region54: #{tpu_custom_call.1} parent=35 // pred_check_branch
          %322 = sbr.rel (%p320) target = $region56
        $region55: #{tpu_custom_call.1} parent=35 // pred_region
          %v323 = vld [vmem:[%s258] sm:$0xff]
          %v324 = vld [vmem:[%s258 + $0x8] sm:$0xff]
          %v325 = vmul.f32 %v323, %v323
          %v326 = vmul.f32 %v324, %v324
          %vm327 = vcmask 523264
          %v328 = vsel %vm327, %v325, 0.0
          %329 = vadd.xlane.f32.xlu0 %v328
          %v330 = vpop.xlane.xlu0 %329
          %v331 = vsel %vm327, %v326, 0.0
          %332 = vadd.xlane.f32.xlu0 %v331
          %v333 = vpop.xlane.xlu0 %332
          %v334 = vrcp.pop 64.0
          %v335 = vmul.f32 %v330, %v334
          %v336 = vmul.f32 %v333, %v334
          %v337 = vadd.f32 %v335, 1e-06
          %v338 = vadd.f32 %v336, 1e-06
          %v339 = vrsqrt.pop %v337
          %v340 = vrsqrt.pop %v338
          %v341 = vmul.f32 %v323, %v339
          %v342 = vmul.f32 %v324, %v340
          %v343 = vld [vmem:[#allocation6] sm:$0x1]
          %v345 = vlaneseq
          %v346 = vshrl.u32 %v345, 7
          %v347 = vsub.s32 0, %v346
          %v348 = vrot.slane %v343, %v347
          %v350 = vmul.f32 %v341, %v348
          %v351 = vmul.f32 %v342, %v348
          %352 = vst.msk [vmem:[#allocation2] sm:$0xff] %vm327, %v350
          %353 = vst.msk [vmem:[#allocation2 + $0x8] sm:$0xff] %vm327, %v351
          %354 = vst.msk [vmem:[%s314] sm:$0xff] %vm327, %v323
          %355 = vst.msk [vmem:[%s314 + $0x8] sm:$0xff] %vm327, %v324
        $region56: #{tpu_custom_call.1} parent=35 // pred_fallthru
          _
        %v356 = vld [vmem:[#allocation2] sm:$0xff]
        %v357 = vld [vmem:[#allocation2 + $0x8] sm:$0xff]
        %v358 = vld [vmem:[%s271] sm:$0xff]
        %v359 = vld [vmem:[%s271 + $0x8] sm:$0xff]
        %v360 = vld [vmem:[%s271 + $0x10] sm:$0xff]
        %v361 = vld [vmem:[%s271 + $0x18] sm:$0xff]
        %v362 = vld [vmem:[%s271 + $0x20] sm:$0xff]
        %v363 = vld [vmem:[%s271 + $0x28] sm:$0xff]
        %v364 = vld [vmem:[%s271 + $0x30] sm:$0xff]
        %v365 = vld [vmem:[%s271 + $0x38] sm:$0xff]
        %v366 = vld [vmem:[%s271 + $0x40] sm:$0xff]
        %v367 = vld [vmem:[%s271 + $0x48] sm:$0xff]
        %v368 = vld [vmem:[%s271 + $0x50] sm:$0xff]
        %v369 = vld [vmem:[%s271 + $0x58] sm:$0xff]
        %v370 = vld [vmem:[%s271 + $0x60] sm:$0xff]
        %v371 = vld [vmem:[%s271 + $0x68] sm:$0xff]
        %v372 = vld [vmem:[%s271 + $0x70] sm:$0xff]
        %v373 = vld [vmem:[%s271 + $0x78] sm:$0xff]
        %vm374 = vcmask 523264
        %v376 = vsel %vm374, %v356, 0
        %v379 = vsel %vm374, %v357, 0
        %381 = vmatprep.subr.mxu0 %v359
        %382 = vmatpush1.msra.mxu0 %v358
        %383 = vmatprep.subr.mxu0 %v361
        %384 = vmatpush1.msra.mxu0 %v360
        %385 = vmatprep.subr.mxu0 %v363
        %386 = vmatpush1.msra.mxu0 %v362
        %387 = vmatprep.subr.mxu0 %v365
        %388 = vmatpush1.msra.mxu0 %v364
        %389 = vmatprep.subr.mxu0 %v367
        %390 = vmatpush1.msra.mxu0 %v366
        %391 = vmatprep.subr.mxu0 %v369
        %392 = vmatpush1.msra.mxu0 %v368
        %393 = vmatprep.subr.mxu0 %v371
        %394 = vmatpush1.msra.mxu0 %v370
        %395 = vmatprep.subr.mxu0 %v373
        %396 = vmatpush1.msra.mxu0 %v372
        %397 = vmatprep.subr.mxu0 0.0
        %398 = vmatpush1.msra.mxu0 0.0
        %399 = vmatprep.subr.mxu0 0.0
        %400 = vmatpush1.msra.mxu0 0.0
        %401 = vmatprep.subr.mxu0 0.0
        %402 = vmatpush1.msra.mxu0 0.0
        %403 = vmatprep.subr.mxu0 0.0
        %404 = vmatpush1.msra.mxu0 0.0
        %405 = vmatprep.subr.mxu0 0.0
        %406 = vmatpush1.msra.mxu0 0.0
        %407 = vmatprep.subr.mxu0 0.0
        %408 = vmatpush1.msra.mxu0 0.0
        %409 = vmatprep.subr.mxu0 0.0
        %410 = vmatpush1.msra.mxu0 0.0
        %411 = vmatprep.subr.mxu0 0.0
        %412 = vmatpush1.msra.mxu0 0.0
        %413 = vmatprep.subr.mxu0 0.0
        %414 = vmatpush1.msra.mxu0 0.0
        %415 = vmatprep.subr.mxu0 0.0
        %416 = vmatpush1.msra.mxu0 0.0
        %417 = vmatprep.subr.mxu0 0.0
        %418 = vmatpush1.msra.mxu0 0.0
        %419 = vmatprep.subr.mxu0 0.0
        %420 = vmatpush1.msra.mxu0 0.0
        %421 = vmatprep.subr.mxu0 0.0
        %422 = vmatpush1.msra.mxu0 0.0
        %423 = vmatprep.subr.mxu0 0.0
        %424 = vmatpush1.msra.mxu0 0.0
        %425 = vmatprep.subr.mxu0 0.0
        %426 = vmatpush1.msra.mxu0 0.0
        %427 = vmatprep.subr.mxu0 0.0
        %428 = vmatpush1.msra.mxu0 0.0
        %429 = vmatprep.subr.mxu0 0.0
        %430 = vmatpush1.msra.mxu0 0.0
        %431 = vmatprep.subr.mxu0 0.0
        %432 = vmatpush1.msra.mxu0 0.0
        %433 = vmatprep.subr.mxu0 0.0
        %434 = vmatpush1.msra.mxu0 0.0
        %435 = vmatprep.subr.mxu0 0.0
        %436 = vmatpush1.msra.mxu0 0.0
        %437 = vmatprep.subr.mxu0 0.0
        %438 = vmatpush1.msra.mxu0 0.0
        %439 = vmatprep.subr.mxu0 0.0
        %440 = vmatpush1.msra.mxu0 0.0
        %441 = vmatprep.subr.mxu0 0.0
        %442 = vmatpush1.msra.mxu0 0.0
        %443 = vmatprep.subr.mxu0 0.0
        %444 = vmatpush1.msra.mxu0 0.0
        %445 = vmatprep.mubr.f32.mxu0 0.0
        %446 = vmatmul.mubr.f32.gmra.mrb[0].mxu0 %v376
        %v447 = vpop.f32.mrb[0].mxu0
        %v448 = vadd.f32 0.0, %v447
        %v449 = vpop.f32.mrb[0].mxu0
        %v450 = vadd.f32 0.0, %v449
        %451 = vmatprep.mubr.f32.mxu0 0.0
        %452 = vmatmul.mubr.f32.gmra.mrb[0].mxu0 %v379
        %v453 = vpop.f32.mrb[0].mxu0
        %v454 = vadd.f32 0.0, %v453
        %v455 = vpop.f32.mrb[0].mxu0
        %v456 = vadd.f32 0.0, %v455
        %457 = vdwg.mxu0
        %v458 = vmul.f32 %v448, 0.5
        %v459 = vmul.f32 %v454, 0.5
        %v460 = vmul.f32 %v448, 0.70710677
        %v461 = vmul.f32 %v454, 0.70710677
        %v462 = vmax.f32 %v460, -4.0
        %v463 = vmax.f32 %v461, -4.0
        %v464 = vmin.f32 %v462, 4.0
        %v465 = vmin.f32 %v463, 4.0
        %v466 = vmul.f32 %v464, %v464
        %v467 = vmul.f32 %v465, %v465
        %v468 = vmul.f32 %v466, -2.7261424e-10
        %v469 = vmul.f32 %v467, -2.7261424e-10
        %v470 = vadd.f32 %v468, 2.7706815e-08
        %v471 = vadd.f32 %v469, 2.7706815e-08
        %v472 = vmul.f32 %v470, %v466
        %v473 = vmul.f32 %v471, %v467
        %v474 = vadd.f32 %v472, -2.101024e-06
        %v475 = vadd.f32 %v473, -2.101024e-06
        %v476 = vmul.f32 %v474, %v466
        %v477 = vmul.f32 %v475, %v467
        %v478 = vadd.f32 %v476, -5.6925062e-05
        %v479 = vadd.f32 %v477, -5.6925062e-05
        %v480 = vmul.f32 %v478, %v466
        %v481 = vmul.f32 %v479, %v467
        %v482 = vadd.f32 %v480, -0.00073499064
        %v483 = vadd.f32 %v481, -0.00073499064
        %v484 = vmul.f32 %v482, %v466
        %v485 = vmul.f32 %v483, %v467
        %v486 = vadd.f32 %v484, -0.0029546
        %v487 = vadd.f32 %v485, -0.0029546
        %v488 = vmul.f32 %v486, %v466
        %v489 = vmul.f32 %v487, %v467
        %v490 = vadd.f32 %v488, -0.016096033
        %v491 = vadd.f32 %v489, -0.016096033
        %v492 = vmul.f32 %v466, -1.45660715e-05
        %v493 = vmul.f32 %v467, -1.45660715e-05
        %v494 = vadd.f32 %v492, -0.00021337405
        %v495 = vadd.f32 %v493, -0.00021337405
        %v496 = vmul.f32 %v494, %v466
        %v497 = vmul.f32 %v495, %v467
        %v498 = vadd.f32 %v496, -0.001682827
        %v499 = vadd.f32 %v497, -0.001682827
        %v500 = vmul.f32 %v498, %v466
        %v501 = vmul.f32 %v499, %v467
        %v502 = vadd.f32 %v500, -0.0073733293
        %v503 = vadd.f32 %v501, -0.0073733293
        %v504 = vmul.f32 %v502, %v466
        %v505 = vmul.f32 %v503, %v467
        %v506 = vadd.f32 %v504, -0.014264739
        %v507 = vadd.f32 %v505, -0.014264739
        %v508 = vmul.f32 %v464, %v490
        %v509 = vmul.f32 %v465, %v491
        %v510 = vrcp.pop %v506
        %v511 = vrcp.pop %v507
        %v512 = vmul.f32 %v508, %v510
        %v513 = vmul.f32 %v509, %v511
        %v514 = vadd.f32 %v512, 1.0
        %v515 = vadd.f32 %v513, 1.0
        %v516 = vmul.f32 %v458, %v514
        %v517 = vmul.f32 %v459, %v515
        %v518 = vmul.f32 %v516, %v450
        %v519 = vmul.f32 %v517, %v456
        %v520 = vld [vmem:[%s280] sm:$0xff]
        %v521 = vld [vmem:[%s280 + $0x8] sm:$0xff]
        %v522 = vld [vmem:[%s280 + $0x10] sm:$0xff]
        %v523 = vld [vmem:[%s280 + $0x18] sm:$0xff]
        %v524 = vld [vmem:[%s280 + $0x20] sm:$0xff]
        %v525 = vld [vmem:[%s280 + $0x28] sm:$0xff]
        %v526 = vld [vmem:[%s280 + $0x30] sm:$0xff]
        %v527 = vld [vmem:[%s280 + $0x38] sm:$0xff]
        %v528 = vld [vmem:[%s280 + $0x40] sm:$0xff]
        %v529 = vld [vmem:[%s280 + $0x48] sm:$0xff]
        %v530 = vld [vmem:[%s280 + $0x50] sm:$0xff]
        %v531 = vld [vmem:[%s280 + $0x58] sm:$0xff]
        %v532 = vld [vmem:[%s280 + $0x60] sm:$0xff]
        %v533 = vld [vmem:[%s280 + $0x68] sm:$0xff]
        %v534 = vld [vmem:[%s280 + $0x70] sm:$0xff]
        %v535 = vld [vmem:[%s280 + $0x78] sm:$0xff]
        %536 = vmatprep.subr.mxu0 0.0
        %537 = vmatpush1.msra.mxu0 %v520
        %538 = vmatprep.subr.mxu0 0.0
        %539 = vmatpush1.msra.mxu0 %v521
        %540 = vmatprep.subr.mxu0 0.0
        %541 = vmatpush1.msra.mxu0 %v522
        %542 = vmatprep.subr.mxu0 0.0
        %543 = vmatpush1.msra.mxu0 %v523
        %544 = vmatprep.subr.mxu0 0.0
        %545 = vmatpush1.msra.mxu0 %v524
        %546 = vmatprep.subr.mxu0 0.0
        %547 = vmatpush1.msra.mxu0 %v525
        %548 = vmatprep.subr.mxu0 0.0
        %549 = vmatpush1.msra.mxu0 %v526
        %550 = vmatprep.subr.mxu0 0.0
        %551 = vmatpush1.msra.mxu0 %v527
        %552 = vmatprep.subr.mxu0 0.0
        %553 = vmatpush1.msra.mxu0 %v528
        %554 = vmatprep.subr.mxu0 0.0
        %555 = vmatpush1.msra.mxu0 %v529
        %556 = vmatprep.subr.mxu0 0.0
        %557 = vmatpush1.msra.mxu0 %v530
        %558 = vmatprep.subr.mxu0 0.0
        %559 = vmatpush1.msra.mxu0 %v531
        %560 = vmatprep.subr.mxu0 0.0
        %561 = vmatpush1.msra.mxu0 %v532
        %562 = vmatprep.subr.mxu0 0.0
        %563 = vmatpush1.msra.mxu0 %v533
        %564 = vmatprep.subr.mxu0 0.0
        %565 = vmatpush1.msra.mxu0 %v534
        %566 = vmatprep.subr.mxu0 0.0
        %567 = vmatpush1.msra.mxu0 %v535
        %568 = vmatprep.subr.mxu0 0.0
        %569 = vmatpush1.msra.mxu0 0.0
        %570 = vmatprep.subr.mxu0 0.0
        %571 = vmatpush1.msra.mxu0 0.0
        %572 = vmatprep.subr.mxu0 0.0
        %573 = vmatpush1.msra.mxu0 0.0
        %574 = vmatprep.subr.mxu0 0.0
        %575 = vmatpush1.msra.mxu0 0.0
        %576 = vmatprep.subr.mxu0 0.0
        %577 = vmatpush1.msra.mxu0 0.0
        %578 = vmatprep.subr.mxu0 0.0
        %579 = vmatpush1.msra.mxu0 0.0
        %580 = vmatprep.subr.mxu0 0.0
        %581 = vmatpush1.msra.mxu0 0.0
        %582 = vmatprep.subr.mxu0 0.0
        %583 = vmatpush1.msra.mxu0 0.0
        %584 = vmatprep.subr.mxu0 0.0
        %585 = vmatpush1.msra.mxu0 0.0
        %586 = vmatprep.subr.mxu0 0.0
        %587 = vmatpush1.msra.mxu0 0.0
        %588 = vmatprep.subr.mxu0 0.0
        %589 = vmatpush1.msra.mxu0 0.0
        %590 = vmatprep.subr.mxu0 0.0
        %591 = vmatpush1.msra.mxu0 0.0
        %592 = vmatprep.subr.mxu0 0.0
        %593 = vmatpush1.msra.mxu0 0.0
        %594 = vmatprep.subr.mxu0 0.0
        %595 = vmatpush1.msra.mxu0 0.0
        %596 = vmatprep.subr.mxu0 0.0
        %597 = vmatpush1.msra.mxu0 0.0
        %598 = vmatprep.subr.mxu0 0.0
        %599 = vmatpush1.msra.mxu0 0.0
        %600 = vmatprep.mubr.f32.mxu0 0.0
        %601 = vmatmul.mubr.f32.gmra.mrb[0].mxu0 %v518
        %v602 = vpop.f32.mrb[0].mxu0
        %v603 = vadd.f32 0.0, %v602
        %v604 = vpop.f32.mrb[0].mxu0
        %605 = vmatprep.mubr.f32.mxu0 0.0
        %606 = vmatmul.mubr.f32.gmra.mrb[0].mxu0 %v519
        %v607 = vpop.f32.mrb[0].mxu0
        %v608 = vadd.f32 0.0, %v607
        %v609 = vpop.f32.mrb[0].mxu0
        %610 = vdwg.mxu0
        %v611 = vld [vmem:[%s314] sm:$0xff]
        %v612 = vld [vmem:[%s314 + $0x8] sm:$0xff]
        %v613 = vadd.f32 %v611, %v603
        %v614 = vadd.f32 %v612, %v608
        %615 = vst.msk [vmem:[%s314] sm:$0xff] %vm374, %v613
        %616 = vst.msk [vmem:[%s314 + $0x8] sm:$0xff] %vm374, %v614
        %s617 = sand.u32 %s141, 1
        %s618 = scalar_lea.sflag [#allocation5], %s617
        %s619 = sand.u32 %s141, 1
        %s620 = smul.addr %s619, 16
        %s621 = scalar_lea.vmem [#allocation10], %s620
        // Predicated region
        $region57: #{tpu_custom_call.1} parent=35 // pred_check
          %p622 = pneg %p151
        $region58: #{tpu_custom_call.1} parent=35 // pred_check_branch
          %624 = sbr.rel (%p622) target = $region60
        $region59: #{tpu_custom_call.1} parent=35 // pred_region
          %s625 = smul.u32 2, %s26
          %s627 = ssub.s32 256, 256
          %628 = vsyncadd %s618, %s627
          %s629 = smul.addr %s625, 128
          %s630 = scalar_lea.hbm %s4, %s629
          %s631 = sshll.u32 %s621, 4
          %s632 = int_to_ptr.vmem [resolvable:$true] %s631
          %637 = dma.vmem_to_hbm [thread:$0]  %s632, 256, %s630, %s618, 128, 128, 8
        $region60: #{tpu_custom_call.1} parent=35 // pred_fallthru
          _
      $region36: #{tpu_custom_call.1} parent=5 // pred_fallthru
        _
      %p638 = scmp.le.s32.totalorder 2, %s17
      // Predicated region
      $region61: #{tpu_custom_call.1} parent=5 // pred_check
        %p639 = pneg %p638
      $region62: #{tpu_custom_call.1} parent=5 // pred_check_branch
        %641 = sbr.rel (%p639) target = $region64
      $region63: #{tpu_custom_call.1} parent=5 // pred_region
        %s642 = ssub.s32 %s17, 2
        // Predicated region
        $region65: #{tpu_custom_call.1} parent=63 // pred_check
          %p643 = pneg %p157
        $region66: #{tpu_custom_call.1} parent=63 // pred_check_branch
          %645 = sbr.rel (%p643) target = $region68
        $region67: #{tpu_custom_call.1} parent=63 // pred_region
          %s646 = sand.u32 %s142, 1
          %s647 = scalar_lea.sflag [#allocation5], %s646
          %s648 = sand.u32 %s142, 1
          %s649 = smul.addr %s648, 16
          %s650 = scalar_lea.vmem [#allocation10], %s649
          %651 = dma.done %s647, 256
        $region68: #{tpu_custom_call.1} parent=63 // pred_fallthru
          _
      $region64: #{tpu_custom_call.1} parent=5 // pred_fallthru
        _
    $region6: #{tpu_custom_call.1} parent=1 // loop_footer
      %s21 = sadd.s32 1, %s17
    $region7: #{tpu_custom_call.1} parent=1 // loop_footer_branch
      %16 = sbr.rel target = $region3
    $region8: #{tpu_custom_call.1} parent=1 // loop_exit
      _
    %652 = vsyncpa [#allocation4], 1
    %s653 = scalar_lea.sflag [#allocation4], 1
    %654 = vsyncpa %s653, 1
    %655 = vsyncpa [#allocation7], 1
    %656 = vsyncpa [#allocation5], 1
    %s657 = scalar_lea.sflag [#allocation5], 1
    %658 = vsyncpa %s657, 1

</llo_original>
